<compile_context>
chip_gen: v5e
topology: v5e:2x2
jax: 0.10.0
libtpu: 0.0.40
codegen_flags: <defaults>
</compile_context>

<pallas_src>
import jax
import jax.numpy as jnp
from jax.experimental import pallas as pl
from jax.experimental.pallas import tpu as pltpu


def _cdiv(a, b):
    return (a + b - 1) // b


def _chip_config():
    """Returns (per-input block bytes, VMEM capacity bytes, #TensorCores to split over)."""
    vmem_bytes = 64 << 20            # conservative default (v7x per-TC VMEM)
    kind = ""
    try:
        vmem_bytes = int(pltpu.get_tpu_info().vmem_capacity_bytes)
    except Exception:
        pass
    try:
        kind = jax.devices()[0].device_kind.lower()
    except Exception:
        pass
    # ~vmem/10 per input block: 6.4 MiB on v7x (64 MiB VMEM), capped at 8 MiB
    # on v5e/v6e (128 MiB VMEM).  Double-buffered 2-input footprint < 45% VMEM.
    block_bytes = max(2 << 20, min(8 << 20, vmem_bytes // 10))
    two_core = any(tag in kind for tag in ("v7", "7x", "v4", "v5p"))
    return block_bytes, vmem_bytes, (2 if two_core else 1)


def _make_kernel(tm, lanes, rows, steps, num_blocks, needs_mask):
    def kernel(x_ref, t_ref, loss_ref, acc_ref):
        p = pl.program_id(0)          # megacore split (parallel)
        i = pl.program_id(1)          # reduction steps (arbitrary)

        @pl.when(i == 0)
        def _init():
            acc_ref[...] = jnp.zeros_like(acc_ref)

        d = x_ref[...].astype(jnp.float32) - t_ref[...].astype(jnp.float32)
        sq = d * d

        def accumulate(v):
            if tm % 8 == 0:
                # Free sublane-split view; sum over the major axis is pure VPU.
                acc_ref[...] += jnp.sum(v.reshape(tm // 8, 8, lanes), axis=0)
            else:
                # Tiny single-block case (tm == rows < 8).
                acc_ref[0:1, :] += jnp.sum(v, axis=0, keepdims=True)

        if needs_mask:
            b = p * steps + i          # logical block index (may be >= num_blocks)

            @pl.when(b < num_blocks - 1)
            def _interior():
                accumulate(sq)

            @pl.when(b >= num_blocks - 1)
            def _boundary():
                # Final (possibly partial) or overflow block: rows past the
                # true row count hold undefined data on TPU, so mask them.
                row = jax.lax.broadcasted_iota(jnp.int32, (tm, lanes), 0)
                n_valid = rows - b * tm          # <= 0 for overflow blocks
                accumulate(jnp.where(row < n_valid, sq, 0.0))
        else:
            accumulate(sq)

        @pl.when(i == pl.num_programs(1) - 1)
        def _fini():
            loss_ref[0, 0] = jnp.sum(acc_ref[...])

    return kernel


def content_loss_forward(x, target, *, target_block_bytes=None):
    """Pallas version of ContentLoss.forward.

    Returns (input_passthrough, mse_loss).  The pass-through is `x` itself
    (forward is an identity on the data).  On shape mismatch the module
    silently skips the loss; we return (x, None).
    """
    if x.shape != target.shape:
        return x, None

    total = int(x.size)
    if total == 0:
        return x, None
    itemsize = jnp.dtype(x.dtype).itemsize

    if total % 128 != 0:
        # TODO(synk): element counts that are not a multiple of 128 cannot be
        # reshaped to a lane-dense 2-D view for free; rather than paying a
        # full-array pad/copy through HBM we fall back to a plain XLA
        # reduction (optimal for the small/odd shapes where this happens).
        diff = x.astype(jnp.float32) - target.astype(jnp.float32)
        return x, jnp.sum(diff * diff) / jnp.float32(total)

    auto_block, vmem_bytes, ncores_hw = _chip_config()
    block_bytes = int(target_block_bytes) if target_block_bytes else auto_block

    # Lane-dense last dim: largest multiple of 128 dividing the element count
    # so the 2-D view is a free (bitcast) reshape — no padding, no copies.
    lanes = 128
    for cand in (1024, 512, 256, 128):
        if total % cand == 0:
            lanes = cand
            break
    rows = total // lanes

    sublane = {4: 8, 2: 16, 1: 32}.get(itemsize, 8)
    tm_cap = max(sublane, (block_bytes // (lanes * itemsize)) // sublane * sublane)

    if rows <= tm_cap:
        tm = rows                     # single full-extent block (always legal)
        num_blocks = 1
    else:
        tm = tm_cap                   # sublane-aligned; last block may be partial
        num_blocks = _cdiv(rows, tm)

    # 2-core split only where it helps (2-TC chips) and only with >= 2 blocks.
    ncores = ncores_hw if num_blocks >= 2 else 1
    steps = _cdiv(num_blocks, ncores)
    needs_clamp = (ncores * steps) != num_blocks
    needs_mask = (rows % tm != 0) or needs_clamp

    def in_index_map(p, i):
        b = p * steps + i
        if needs_clamp:
            # Overflow step re-reads the last valid block (its contribution is
            # masked to zero in-kernel) — avoids any OOB DMA and any padding.
            b = jnp.minimum(b, num_blocks - 1)
        return (b, 0)

    x2 = x.reshape(rows, lanes)
    t2 = target.reshape(rows, lanes)

    block_in_bytes = tm * lanes * itemsize
    vmem_limit = 10 * block_in_bytes + (4 << 20)     # buffers + f32 temporaries
    vmem_limit = max(vmem_limit, 16 << 20)
    vmem_limit = int(min(vmem_limit, max(vmem_bytes - (4 << 20), 16 << 20)))

    cost = pl.CostEstimate(flops=3 * total, transcendentals=0,
                           bytes_accessed=2 * total * itemsize)

    partial = pl.pallas_call(
        _make_kernel(tm, lanes, rows, steps, num_blocks, needs_mask),
        out_shape=jax.ShapeDtypeStruct((ncores, 1), jnp.float32),
        grid_spec=pltpu.PrefetchScalarGridSpec(
            num_scalar_prefetch=0,
            grid=(ncores, steps),
            in_specs=[
                pl.BlockSpec((tm, lanes), in_index_map),
                pl.BlockSpec((tm, lanes), in_index_map),
            ],
            out_specs=pl.BlockSpec((1, 1), lambda p, i: (p, 0),
                                   memory_space=pltpu.SMEM),
            scratch_shapes=[pltpu.VMEM((8, lanes), jnp.float32)],
        ),
        compiler_params=pltpu.CompilerParams(
            dimension_semantics=("parallel", "arbitrary"),
            vmem_limit_bytes=vmem_limit,
        ),
        cost_estimate=cost,
    )(x2, t2)

    loss = jnp.sum(partial) / jnp.float32(total)     # mean -> F.mse_loss
    return x, loss


if __name__ == "__main__":
    key = jax.random.PRNGKey(0)
    kx, kt = jax.random.split(key)

    # 1) Primary: NCHW feature map, f32 (single-block fast path).
    B, C, H, W = 2, 4, 16, 16
    x = jax.random.normal(kx, (B, C, H, W), dtype=jnp.float32)
    target = jax.random.normal(kt, (B, C, H, W), dtype=jnp.float32)
    out, loss = content_loss_forward(x, target)
    out, loss = jax.block_until_ready((out, loss))
    ref = jnp.mean((x - target) ** 2)
    assert jnp.allclose(loss, ref, rtol=1e-5, atol=1e-6), (loss, ref)
    assert out is x

    # 2) Multi-block path with a partial (masked) final row-block.
    kx2, kt2 = jax.random.split(kt)
    x2 = jax.random.normal(kx2, (1, 3, 16, 256), dtype=jnp.float32)
    t2 = jax.random.normal(kt2, (1, 3, 16, 256), dtype=jnp.float32)
    _, loss2 = jax.block_until_ready(
        content_loss_forward(x2, t2, target_block_bytes=32 << 10))
    ref2 = jnp.mean((x2 - t2) ** 2)
    assert jnp.allclose(loss2, ref2, rtol=1e-5, atol=1e-6), (loss2, ref2)

    # 3) bf16 inputs (sub-32-bit packing path, f32 accumulation).
    xb, tb = x.astype(jnp.bfloat16), target.astype(jnp.bfloat16)
    _, loss3 = jax.block_until_ready(content_loss_forward(xb, tb))
    ref3 = jnp.mean((xb.astype(jnp.float32) - tb.astype(jnp.float32)) ** 2)
    assert jnp.allclose(loss3, ref3, rtol=1e-5, atol=1e-6), (loss3, ref3)

    # 4) Element count not a multiple of 128 -> plain XLA fallback (no pad copy).
    kx3, kt3 = jax.random.split(kt2)
    x4 = jax.random.normal(kx3, (1, 3, 14, 14), dtype=jnp.float32)
    t4 = jax.random.normal(kt3, (1, 3, 14, 14), dtype=jnp.float32)
    _, loss4 = jax.block_until_ready(content_loss_forward(x4, t4))
    ref4 = jnp.mean((x4 - t4) ** 2)
    assert jnp.allclose(loss4, ref4, rtol=1e-5, atol=1e-6), (loss4, ref4)

    # 5) Shape mismatch: module skips the loss; forward is still a pass-through.
    out5, loss5 = content_loss_forward(x, x2)
    assert out5 is x and loss5 is None

    print("KERNEL_OK")
</pallas_src>

<mosaic_0001>
module attributes {stable_mosaic.version = 11 : i64} {
  func.func @kernel(%arg0: i32, %arg1: i32, %arg2: memref<2x1024xf32, #tpu.memory_space<vmem>>, %arg3: memref<2x1024xf32, #tpu.memory_space<vmem>>, %arg4: memref<1x1xf32, #tpu.memory_space<smem>>, %arg5: memref<8x1024xf32, #tpu.memory_space<vmem>>) attributes {dimension_semantics = [#tpu.dimension_semantics<parallel>, #tpu.dimension_semantics<arbitrary>], iteration_bounds = array<i64: 1, 1>, scalar_prefetch = 0 : i64, scratch_operands = 1 : i64, tpu.core_type = #tpu.core_type<tc>, window_params = [{transform_indices = @transform_0, window_bounds = array<i64: 2, 1024>}, {transform_indices = @transform_1, window_bounds = array<i64: 2, 1024>}, {transform_indices = @transform_2, window_bounds = array<i64: 1, 1>}]} {
    %c0_i32 = arith.constant 0 : i32
    %0 = arith.cmpi eq, %arg1, %c0_i32 : i32
    %1 = arith.extui %0 : i1 to i32
    %c0_i32_0 = arith.constant 0 : i32
    %2 = arith.cmpi ne, %1, %c0_i32_0 : i32
    scf.if %2 {
      %cst_10 = arith.constant 0.000000e+00 : f32
      %15 = vector.broadcast %cst_10 : f32 to vector<8x1024xf32>
      %c0_11 = arith.constant 0 : index
      %c0_12 = arith.constant 0 : index
      %16 = vector.load %arg5[%c0_11, %c0_12] : memref<8x1024xf32, #tpu.memory_space<vmem>>, vector<8x1024xf32>
      tpu.vector_store %arg5[%c0_11, %c0_12], %15 {strides = array<i32>} : memref<8x1024xf32, #tpu.memory_space<vmem>>, vector<8x1024xf32>,
    } else {
    }
    %c0 = arith.constant 0 : index
    %c0_1 = arith.constant 0 : index
    %3 = vector.load %arg2[%c0, %c0_1] : memref<2x1024xf32, #tpu.memory_space<vmem>>, vector<2x1024xf32>
    %c0_2 = arith.constant 0 : index
    %c0_3 = arith.constant 0 : index
    %4 = vector.load %arg3[%c0_2, %c0_3] : memref<2x1024xf32, #tpu.memory_space<vmem>>, vector<2x1024xf32>
    %5 = arith.subf %3, %4 : vector<2x1024xf32>
    %6 = arith.mulf %5, %5 : vector<2x1024xf32>
    %c0_4 = arith.constant 0 : index
    %c0_5 = arith.constant 0 : index
    %7 = vector.load %arg5[%c0_4, %c0_5] : memref<8x1024xf32, #tpu.memory_space<vmem>>, vector<1x1024xf32>
    %cst = arith.constant dense<0.000000e+00> : vector<1024xf32>
    %8 = vector.multi_reduction <add>, %6, %cst [0] : vector<2x1024xf32> to vector<1024xf32>
    %9 = vector.shape_cast %8 : vector<1024xf32> to vector<1x1024xf32>
    %10 = arith.addf %7, %9 : vector<1x1024xf32>
    %c0_6 = arith.constant 0 : index
    %c0_7 = arith.constant 0 : index
    %11 = vector.load %arg5[%c0_6, %c0_7] : memref<8x1024xf32, #tpu.memory_space<vmem>>, vector<1x1024xf32>
    tpu.vector_store %arg5[%c0_6, %c0_7], %10 {strides = array<i32>} : memref<8x1024xf32, #tpu.memory_space<vmem>>, vector<1x1024xf32>,
    %c0_i32_8 = arith.constant 0 : i32
    %12 = arith.cmpi eq, %arg1, %c0_i32_8 : i32
    %13 = arith.extui %12 : i1 to i32
    %c0_i32_9 = arith.constant 0 : i32
    %14 = arith.cmpi ne, %13, %c0_i32_9 : i32
    scf.if %14 {
      %c0_10 = arith.constant 0 : index
      %c0_11 = arith.constant 0 : index
      %15 = vector.load %arg5[%c0_10, %c0_11] : memref<8x1024xf32, #tpu.memory_space<vmem>>, vector<8x1024xf32>
      %16 = vector.shape_cast %15 : vector<8x1024xf32> to vector<1x8x1024xf32>
      %cst_12 = arith.constant dense<0.000000e+00> : vector<1xf32>
      %17 = vector.multi_reduction <add>, %16, %cst_12 [1, 2] : vector<1x8x1024xf32> to vector<1xf32>
      %18 = vector.shape_cast %17 : vector<1xf32> to vector<1x1x1xf32>
      %19 = vector.extract %18[0, 0, 0] : f32 from vector<1x1x1xf32>
      %c0_13 = arith.constant 0 : index
      %c0_14 = arith.constant 0 : index
      %20 = memref.load %arg4[%c0_13, %c0_14] : memref<1x1xf32, #tpu.memory_space<smem>>
      memref.store %19, %arg4[%c0_13, %c0_14] : memref<1x1xf32, #tpu.memory_space<smem>>
    } else {
    }
    return
  }
  func.func @transform_0(%arg0: i32, %arg1: i32) -> (i32, i32) {
    %c1_i32 = arith.constant 1 : i32
    %0 = arith.muli %arg0, %c1_i32 : i32
    %1 = arith.addi %0, %arg1 : i32
    %c0_i32 = arith.constant 0 : i32
    %c0_i32_0 = arith.constant 0 : i32
    return %1, %c0_i32 : i32, i32
  }
  func.func @transform_1(%arg0: i32, %arg1: i32) -> (i32, i32) {
    %c1_i32 = arith.constant 1 : i32
    %0 = arith.muli %arg0, %c1_i32 : i32
    %1 = arith.addi %0, %arg1 : i32
    %c0_i32 = arith.constant 0 : i32
    %c0_i32_0 = arith.constant 0 : i32
    return %1, %c0_i32 : i32, i32
  }
  func.func @transform_2(%arg0: i32, %arg1: i32) -> (i32, i32) {
    %c0_i32 = arith.constant 0 : i32
    %c0_i32_0 = arith.constant 0 : i32
    return %arg0, %c0_i32 : i32, i32
  }
}

</mosaic_0001>

<llo_original>
// kernel: tpu_custom_call.1
$region0: #{tpu_custom_call.1}
  #allocation0 [shape = 'u32[]', space=smem, size = 0x4, offset = 0x4, fixed_abs, tag = 'smem constant byte address 0x4 - core index']
  #allocation1 [shape = 'u32[72,128]{1,0:T(1,128)}', space=vmem, size = 0x9000, scoped, tag = 'internal scratch']
  #allocation2 [shape = 'f32[8,1024]{1,0:T(8,128)}', space=vmem, size = 0x8000, scoped, tag = 'scratch operand']
  %s0 = inlined_call_operand.hbm [shape: f32[2,1024], index: 0, kind: input, shape index: {}]
  %s1 = inlined_call_operand.hbm [shape: f32[2,1024], index: 1, kind: input, shape index: {}]
  %s2 = inlined_call_operand.hbm [shape: f32[1,1], index: 2, kind: output, shape index: {}]
  %s3 = sld [smem:[#allocation0]]
  $region34: #{tpu_custom_call.1} parent=0
    _
  %s5 = ssub.s32 1, %s3
  %s6 = scalar_select 0, %s5, %s3
  $region1: #{tpu_custom_call.1} parent=0
    #allocation3 [shape = 'u8[8192]{0}', space=vmem, size = 0x2000, scoped, tag = 'input window, operand 0, single buffered']
    #allocation4 [shape = 's32[1]{0}', space=sflag, size = 0x4, scoped, tag = 'scoped memory for tpu_custom_call.1']
    #allocation5 [shape = 's32[1]{0}', space=sflag, size = 0x4, scoped, tag = 'scoped memory for tpu_custom_call.1']
    #allocation6 [shape = 'u8[8192]{0}', space=vmem, size = 0x2000, scoped, tag = 'input window, operand 1, single buffered']
    #allocation7 [shape = 's32[1]{0}', space=sflag, size = 0x4, scoped, tag = 'scoped memory for tpu_custom_call.1']
    #allocation8 [shape = 'u8[512]{0}', space=smem, size = 0x200, scoped, tag = 'output window, operand 0, single buffered']
    %7 = vsyncpa [#allocation4], 0
    %8 = vsyncpa [#allocation7], 0
    %9 = vsyncpa [#allocation5], 0
    // Predicated region
    $region2: #{tpu_custom_call.1} parent=1 // pred_check
      _
    $region3: #{tpu_custom_call.1} parent=1 // pred_check_branch
      %11 = sbr.rel (0) target = $region5
    $region4: #{tpu_custom_call.1} parent=1 // pred_region
      %s12 = sadd.s32 0, 0
      %14 = vsyncadd [#allocation4], 0
      %s15 = smul.addr %s12, 8
      %s16 = smul.addr %s15, 2
      %s17 = scalar_lea.hbm %s0, %s16
      %s19 = sshll.u32 %s17, 4
      %s20 = int_to_ptr.hbm [resolvable:$true] %s19
      %s21 = sshll.u32 [#allocation3], 4
      %s22 = int_to_ptr.vmem [resolvable:$true] %s21
      %24 = dma.hbm_to_vmem [thread:$0]  %s20, 256, %s22, [#allocation4]
    $region5: #{tpu_custom_call.1} parent=1 // pred_fallthru
      _
    // Predicated region
    $region6: #{tpu_custom_call.1} parent=1 // pred_check
      _
    $region7: #{tpu_custom_call.1} parent=1 // pred_check_branch
      %26 = sbr.rel (0) target = $region9
    $region8: #{tpu_custom_call.1} parent=1 // pred_region
      %s27 = sadd.s32 0, 0
      %29 = vsyncadd [#allocation7], 0
      %s30 = smul.addr %s27, 8
      %s31 = smul.addr %s30, 2
      %s32 = scalar_lea.hbm %s1, %s31
      %s34 = sshll.u32 %s32, 4
      %s35 = int_to_ptr.hbm [resolvable:$true] %s34
      %s36 = sshll.u32 [#allocation6], 4
      %s37 = int_to_ptr.vmem [resolvable:$true] %s36
      %39 = dma.hbm_to_vmem [thread:$0]  %s35, 256, %s37, [#allocation7]
    $region9: #{tpu_custom_call.1} parent=1 // pred_fallthru
      _
    // Predicated region
    $region10: #{tpu_custom_call.1} parent=1 // pred_check
      _
    $region11: #{tpu_custom_call.1} parent=1 // pred_check_branch
      %41 = sbr.rel (0) target = $region13
    $region12: #{tpu_custom_call.1} parent=1 // pred_region
      %43 = dma.done [#allocation4], 256
    $region13: #{tpu_custom_call.1} parent=1 // pred_fallthru
      _
    // Predicated region
    $region14: #{tpu_custom_call.1} parent=1 // pred_check
      _
    $region15: #{tpu_custom_call.1} parent=1 // pred_check_branch
      %45 = sbr.rel (0) target = $region17
    $region16: #{tpu_custom_call.1} parent=1 // pred_region
      %47 = dma.done [#allocation7], 256
    $region17: #{tpu_custom_call.1} parent=1 // pred_fallthru
      _
    %s48 = sadd.s32 0, 0
    %s49 = sadd.s32 0, 0
    %p50 = scmp.eq.s32.totalorder 0, 0
    // Predicated region
    $region18: #{tpu_custom_call.1} parent=1 // pred_check
      %p51 = pneg %p50
    $region19: #{tpu_custom_call.1} parent=1 // pred_check_branch
      %53 = sbr.rel (%p51) target = $region21
    $region20: #{tpu_custom_call.1} parent=1 // pred_region
      %54 = vst [vmem:[#allocation2] sm:$0xff] 0.0
      %55 = vst [vmem:[#allocation2 + $0x8] sm:$0xff] 0.0
      %56 = vst [vmem:[#allocation2 + $0x10] sm:$0xff] 0.0
      %57 = vst [vmem:[#allocation2 + $0x18] sm:$0xff] 0.0
      %58 = vst [vmem:[#allocation2 + $0x20] sm:$0xff] 0.0
      %59 = vst [vmem:[#allocation2 + $0x28] sm:$0xff] 0.0
      %60 = vst [vmem:[#allocation2 + $0x30] sm:$0xff] 0.0
      %61 = vst [vmem:[#allocation2 + $0x38] sm:$0xff] 0.0
    $region21: #{tpu_custom_call.1} parent=1 // pred_fallthru
      _
    %v62 = vld [vmem:[#allocation3] sm:$0xff]
    %v63 = vld [vmem:[#allocation3 + $0x8] sm:$0xff]
    %v64 = vld [vmem:[#allocation6] sm:$0xff]
    %v65 = vld [vmem:[#allocation6 + $0x8] sm:$0xff]
    %v66 = vsub.f32 %v62, %v64
    %v67 = vsub.f32 %v63, %v65
    %v68 = vmul.f32 %v66, %v66
    %v69 = vmul.f32 %v67, %v67
    %v70 = vld [vmem:[#allocation2] ss:$8 sm:$0xf]
    %v71 = vld [vmem:[#allocation2] ss:$8 sm:$0xf0]
    %v72 = vor.u32 %v70, %v71
    %75 = vst [vmem:[#allocation1] ss:$4 sm:$0xff] %v68
    %s76 = scalar_lea.vmem [#allocation1], 32
    %77 = vst [vmem:[%s76] ss:$4 sm:$0xff] %v69
    %v78 = vld.sshfl [vmem:[#allocation1] sm:$0xff pattern:$0x73625140]
    %v79 = vld.sshfl [vmem:[#allocation1 + $0x8] sm:$0xff pattern:$0x73625140]
    %v80 = vld.sshfl [vmem:[#allocation1 + $0x10] sm:$0xff pattern:$0x73625140]
    %v81 = vld.sshfl [vmem:[#allocation1 + $0x18] sm:$0xff pattern:$0x73625140]
    %v82 = vld.sshfl [vmem:[#allocation1 + $0x20] sm:$0xff pattern:$0x73625140]
    %v83 = vld.sshfl [vmem:[#allocation1 + $0x28] sm:$0xff pattern:$0x73625140]
    %v84 = vld.sshfl [vmem:[#allocation1 + $0x30] sm:$0xff pattern:$0x73625140]
    %v85 = vld.sshfl [vmem:[#allocation1 + $0x38] sm:$0xff pattern:$0x73625140]
    %vm94 = vcmask 1041408
    %v95 = vsel %vm94, %v78, 0.0
    %v96 = vrot.slane %v95, 4
    %v97 = vadd.f32 %v95, %v96
    %v98 = vrot.slane %v97, 2
    %v99 = vadd.f32 %v97, %v98
    %v100 = vrot.slane %v99, 1
    %v101 = vadd.f32 %v99, %v100
    %v102 = vsel %vm94, %v79, 0.0
    %v103 = vrot.slane %v102, 4
    %v104 = vadd.f32 %v102, %v103
    %v105 = vrot.slane %v104, 2
    %v106 = vadd.f32 %v104, %v105
    %v107 = vrot.slane %v106, 1
    %v108 = vadd.f32 %v106, %v107
    %v109 = vsel %vm94, %v80, 0.0
    %v110 = vrot.slane %v109, 4
    %v111 = vadd.f32 %v109, %v110
    %v112 = vrot.slane %v111, 2
    %v113 = vadd.f32 %v111, %v112
    %v114 = vrot.slane %v113, 1
    %v115 = vadd.f32 %v113, %v114
    %v116 = vsel %vm94, %v81, 0.0
    %v117 = vrot.slane %v116, 4
    %v118 = vadd.f32 %v116, %v117
    %v119 = vrot.slane %v118, 2
    %v120 = vadd.f32 %v118, %v119
    %v121 = vrot.slane %v120, 1
    %v122 = vadd.f32 %v120, %v121
    %v123 = vsel %vm94, %v82, 0.0
    %v124 = vrot.slane %v123, 4
    %v125 = vadd.f32 %v123, %v124
    %v126 = vrot.slane %v125, 2
    %v127 = vadd.f32 %v125, %v126
    %v128 = vrot.slane %v127, 1
    %v129 = vadd.f32 %v127, %v128
    %v130 = vsel %vm94, %v83, 0.0
    %v131 = vrot.slane %v130, 4
    %v132 = vadd.f32 %v130, %v131
    %v133 = vrot.slane %v132, 2
    %v134 = vadd.f32 %v132, %v133
    %v135 = vrot.slane %v134, 1
    %v136 = vadd.f32 %v134, %v135
    %v137 = vsel %vm94, %v84, 0.0
    %v138 = vrot.slane %v137, 4
    %v139 = vadd.f32 %v137, %v138
    %v140 = vrot.slane %v139, 2
    %v141 = vadd.f32 %v139, %v140
    %v142 = vrot.slane %v141, 1
    %v143 = vadd.f32 %v141, %v142
    %v144 = vsel %vm94, %v85, 0.0
    %v145 = vrot.slane %v144, 4
    %v146 = vadd.f32 %v144, %v145
    %v147 = vrot.slane %v146, 2
    %v148 = vadd.f32 %v146, %v147
    %v149 = vrot.slane %v148, 1
    %v150 = vadd.f32 %v148, %v149
    %v159 = vrot.slane %v108, 7
    %v160 = vrot.slane %v115, 6
    %v161 = vrot.slane %v122, 5
    %v162 = vrot.slane %v129, 4
    %v163 = vrot.slane %v136, 3
    %v164 = vrot.slane %v143, 2
    %v165 = vrot.slane %v150, 1
    %vm166 = vcmask 1040384
    %v167 = vsel %vm166, %v101, %v159
    %vm168 = vcmask 1042434
    %v169 = vsel %vm168, %v160, %v161
    %v170 = vsel %vm94, %v167, %v169
    %vm171 = vcmask 1044484
    %v172 = vsel %vm171, %v162, %v163
    %vm173 = vcmask 1046534
    %v174 = vsel %vm173, %v164, %v165
    %vm175 = vcmask 1045508
    %v176 = vsel %vm175, %v172, %v174
    %vm177 = vcmask 1043456
    %v178 = vsel %vm177, %v170, %v176
    %v180 = vadd.f32 %v72, %v178
    %181 = vst [vmem:[#allocation2] ss:$8 sm:$0xf] %v180
    %182 = vst [vmem:[#allocation2] ss:$8 sm:$0xf0] %v180
    // Predicated region
    $region22: #{tpu_custom_call.1} parent=1 // pred_check
      %p183 = pneg %p50
    $region23: #{tpu_custom_call.1} parent=1 // pred_check_branch
      %185 = sbr.rel (%p183) target = $region25
    $region24: #{tpu_custom_call.1} parent=1 // pred_region
      %v186 = vld [vmem:[#allocation2] sm:$0xff]
      %v187 = vld [vmem:[#allocation2 + $0x8] sm:$0xff]
      %v188 = vld [vmem:[#allocation2 + $0x10] sm:$0xff]
      %v189 = vld [vmem:[#allocation2 + $0x18] sm:$0xff]
      %v190 = vld [vmem:[#allocation2 + $0x20] sm:$0xff]
      %v191 = vld [vmem:[#allocation2 + $0x28] sm:$0xff]
      %v192 = vld [vmem:[#allocation2 + $0x30] sm:$0xff]
      %v193 = vld [vmem:[#allocation2 + $0x38] sm:$0xff]
      %v194 = vadd.f32 %v186, %v187
      %v195 = vadd.f32 %v194, %v188
      %v196 = vadd.f32 %v195, %v189
      %v197 = vadd.f32 %v196, %v190
      %v198 = vadd.f32 %v197, %v191
      %v199 = vadd.f32 %v198, %v192
      %v200 = vadd.f32 %v199, %v193
      %201 = vadd.xlane.f32.xlu0 %v200
      %v202 = vpop.xlane.xlu0 %201
      %v203 = vrot.slane %v202, 4
      %v204 = vadd.f32 %v202, %v203
      %v205 = vrot.slane %v204, 2
      %v206 = vadd.f32 %v204, %v205
      %v207 = vrot.slane %v206, 1
      %v208 = vadd.f32 %v206, %v207
      %s209 = vtos %v208
      %s210 = scalar_lea.smem [#allocation8], 0
      %211 = sst [smem:[%s210]] %s209
    $region25: #{tpu_custom_call.1} parent=1 // pred_fallthru
      _
    // Predicated region
    $region26: #{tpu_custom_call.1} parent=1 // pred_check
      _
    $region27: #{tpu_custom_call.1} parent=1 // pred_check_branch
      %213 = sbr.rel (0) target = $region29
    $region28: #{tpu_custom_call.1} parent=1 // pred_region
      %215 = vsyncadd [#allocation5], 0
      %s217 = sshll.u32 %s2, 4
      %s218 = int_to_ptr.hbm [resolvable:$true] %s217
      %220 = dma.smem_to_hbm [#allocation8], 16, %s218, [#allocation5]
    $region29: #{tpu_custom_call.1} parent=1 // pred_fallthru
      _
    // Predicated region
    $region30: #{tpu_custom_call.1} parent=1 // pred_check
      _
    $region31: #{tpu_custom_call.1} parent=1 // pred_check_branch
      %222 = sbr.rel (0) target = $region33
    $region32: #{tpu_custom_call.1} parent=1 // pred_region
      %224 = dma.done [#allocation5], 16
    $region33: #{tpu_custom_call.1} parent=1 // pred_fallthru
      _
    %225 = sfence
    %226 = vsyncpa [#allocation4], 1
    %227 = vsyncpa [#allocation7], 1
    %228 = vsyncpa [#allocation5], 1

</llo_original>
